<compile_context>
chip_gen: v7x
topology: tpu7x:2x2x1
jax: 0.10.0
libtpu: 0.0.40
codegen_flags: <defaults>
</compile_context>

<pallas_src>
import jax
import jax.numpy as jnp
from jax.experimental import pallas as pl
from jax.experimental.pallas import tpu as pltpu

IN_FEATURES = 2048
HIDDEN = 100
HIDDEN_PAD = 128          # lane-dense hidden width (zero-padded columns)
NEG_BIG = -1e30           # bias for padded output lanes -> exp() == 0


def _mlp_softmax_kernel(x_ref, w1_ref, b1_ref, w2_ref, b2_ref, o_ref):
    # Hidden layer: (TB, 2048)[bf16] @ (2048, 128)[bf16] with f32 accumulate.
    h = jnp.dot(x_ref[...], w1_ref[...], preferred_element_type=jnp.float32)
    h = jnp.maximum(h + b1_ref[...], 0.0)              # padded cols: relu(0+0)=0
    # Output layer: (TB, 128)[f32] @ (128, OUT_PAD)[f32] (tiny, keep f32).
    logits = jnp.dot(h, w2_ref[...], preferred_element_type=jnp.float32)
    logits = logits + b2_ref[...]                      # padded lanes get -1e30
    # Row-wise numerically-stable softmax; padded lanes vanish (exp -> 0).
    m = jnp.max(logits, axis=1, keepdims=True)
    e = jnp.exp(logits - m)
    denom = jnp.sum(e, axis=1, keepdims=True)
    o_ref[...] = (e * pl.reciprocal(denom, approx=True)).astype(o_ref.dtype)


def network_forward(features, w1, b1, w2, b2, *, tile_b=256,
                    compute_dtype=jnp.bfloat16):
    """features: (B, 2048) f32. Returns softmax(relu(x@w1+b1)@w2+b2), shape (B, out_size)."""
    B, F = features.shape
    assert F == IN_FEATURES
    out_size = w2.shape[1]
    out_pad = max(128, ((out_size + 127) // 128) * 128)

    # Lane-dense padded weights (computed once per call; zero kernel-side cost).
    w1_p = jnp.zeros((IN_FEATURES, HIDDEN_PAD), compute_dtype)
    w1_p = w1_p.at[:, :HIDDEN].set(w1.astype(compute_dtype))
    b1_p = jnp.zeros((1, HIDDEN_PAD), jnp.float32).at[:, :HIDDEN].set(b1.astype(jnp.float32))
    w2_p = jnp.zeros((HIDDEN_PAD, out_pad), jnp.float32)
    w2_p = w2_p.at[:HIDDEN, :out_size].set(w2.astype(jnp.float32))
    b2_p = jnp.full((1, out_pad), NEG_BIG, jnp.float32)
    b2_p = b2_p.at[:, :out_size].set(b2.astype(jnp.float32))

    x = features.astype(compute_dtype)

    # Batch tiling without host-side padding:
    #  - B <= tile_b: one block covering the full batch (block == full dim is legal).
    #  - B  > tile_b: cdiv grid; Pallas masks the ragged edge block (softmax is row-wise,
    #    so garbage pad rows never touch valid rows and their stores are dropped).
    tb = min(tile_b, B)
    grid = (pl.cdiv(B, tb),)

    itemsize = jnp.dtype(compute_dtype).itemsize
    cost = pl.CostEstimate(
        flops=2 * B * IN_FEATURES * HIDDEN_PAD + 2 * B * HIDDEN_PAD * out_pad,
        transcendentals=B * out_pad + B,
        bytes_accessed=(B * IN_FEATURES * itemsize          # x
                        + IN_FEATURES * HIDDEN_PAD * itemsize  # W1
                        + HIDDEN_PAD * out_pad * 4             # W2
                        + (HIDDEN_PAD + out_pad) * 4           # biases
                        + B * out_pad * 4),                    # output
    )

    out = pl.pallas_call(
        _mlp_softmax_kernel,
        out_shape=jax.ShapeDtypeStruct((B, out_pad), jnp.float32),
        grid_spec=pltpu.PrefetchScalarGridSpec(
            num_scalar_prefetch=0,
            grid=grid,
            in_specs=[
                pl.BlockSpec((tb, IN_FEATURES), lambda i: (i, 0)),       # x tile
                pl.BlockSpec((IN_FEATURES, HIDDEN_PAD), lambda i: (0, 0)),  # W1 (resident)
                pl.BlockSpec((1, HIDDEN_PAD), lambda i: (0, 0)),         # b1
                pl.BlockSpec((HIDDEN_PAD, out_pad), lambda i: (0, 0)),   # W2
                pl.BlockSpec((1, out_pad), lambda i: (0, 0)),            # b2
            ],
            out_specs=pl.BlockSpec((tb, out_pad), lambda i: (i, 0)),
        ),
        compiler_params=pltpu.CompilerParams(
            dimension_semantics=("parallel",),
        ),
        cost_estimate=cost,
    )(x, w1_p, b1_p, w2_p, b2_p)

    # Drop the padded softmax lanes (they are exactly 0).
    return out[:, :out_size]


def init_params(key, output_size):
    """Deterministic synthetic params matching nn.Linear(2048,100), nn.Linear(100,out)."""
    k1, k2, k3, k4 = jax.random.split(key, 4)
    lim1 = 1.0 / (IN_FEATURES ** 0.5)
    lim2 = 1.0 / (HIDDEN ** 0.5)
    w1 = jax.random.uniform(k1, (IN_FEATURES, HIDDEN), jnp.float32, -lim1, lim1)
    b1 = jax.random.uniform(k2, (HIDDEN,), jnp.float32, -lim1, lim1)
    w2 = jax.random.uniform(k3, (HIDDEN, output_size), jnp.float32, -lim2, lim2)
    b2 = jax.random.uniform(k4, (output_size,), jnp.float32, -lim2, lim2)
    return w1, b1, w2, b2


if __name__ == "__main__":
    key = jax.random.PRNGKey(0)
    OUTPUT_SIZE = 10          # Galaxy-Zoo class count for this head
    # TODO(synk): sigmoid head variant (softmax_sigmoid='sigmoid') not implemented;
    # module default 'softmax' is what this kernel computes.

    kx, kp = jax.random.split(key)
    w1, b1, w2, b2 = init_params(kp, OUTPUT_SIZE)

    def ref_forward(x):
        h = jnp.maximum(x @ w1 + b1, 0.0)
        return jax.nn.softmax(h @ w2 + b2, axis=1)

    # batch=2: small smoke test (single full-array block).
    # batch=300: multi-step grid with a ragged (masked) edge block.
    for batch in (2, 300):
        x = jax.random.normal(jax.random.fold_in(kx, batch),
                              (batch, IN_FEATURES), jnp.float32)
        out = jax.block_until_ready(network_forward(x, w1, b1, w2, b2))
        ref = ref_forward(x)
        assert out.shape == (batch, OUTPUT_SIZE)
        # bf16 matmul inputs + approx reciprocal => modest tolerance vs f32 reference.
        assert jnp.allclose(out, ref, atol=2e-2, rtol=2e-2), \
            float(jnp.max(jnp.abs(out - ref)))
        assert jnp.allclose(jnp.sum(out, axis=1), 1.0, atol=5e-3)

    print("KERNEL_OK")
</pallas_src>

<mosaic_0001>
module attributes {stable_mosaic.version = 11 : i64} {
  func.func @_mlp_softmax_kernel(%arg0: i32, %arg1: memref<2x2048xbf16, #tpu.memory_space<vmem>>, %arg2: memref<2048x128xbf16, #tpu.memory_space<vmem>>, %arg3: memref<1x128xf32, #tpu.memory_space<vmem>>, %arg4: memref<128x128xf32, #tpu.memory_space<vmem>>, %arg5: memref<1x128xf32, #tpu.memory_space<vmem>>, %arg6: memref<2x128xf32, #tpu.memory_space<vmem>>) attributes {dimension_semantics = [#tpu.dimension_semantics<parallel>], iteration_bounds = array<i64: 1>, scalar_prefetch = 0 : i64, scratch_operands = 0 : i64, tpu.core_type = #tpu.core_type<tc>, window_params = [{transform_indices = @transform_0, window_bounds = array<i64: 2, 2048>}, {pipeline_mode = #tpu.pipeline_mode<synchronous>, transform_indices = @transform_1, window_bounds = array<i64: 2048, 128>}, {pipeline_mode = #tpu.pipeline_mode<synchronous>, transform_indices = @transform_2, window_bounds = array<i64: 1, 128>}, {pipeline_mode = #tpu.pipeline_mode<synchronous>, transform_indices = @transform_3, window_bounds = array<i64: 128, 128>}, {pipeline_mode = #tpu.pipeline_mode<synchronous>, transform_indices = @transform_4, window_bounds = array<i64: 1, 128>}, {transform_indices = @transform_5, window_bounds = array<i64: 2, 128>}]} {
    %c0 = arith.constant 0 : index
    %c0_0 = arith.constant 0 : index
    %0 = vector.load %arg1[%c0, %c0_0] : memref<2x2048xbf16, #tpu.memory_space<vmem>>, vector<2x2048xbf16>
    %c0_1 = arith.constant 0 : index
    %c0_2 = arith.constant 0 : index
    %1 = vector.load %arg2[%c0_1, %c0_2] : memref<2048x128xbf16, #tpu.memory_space<vmem>>, vector<2048x128xbf16>
    %cst = arith.constant dense<0.000000e+00> : vector<2x128xf32>
    %2 = tpu.matmul %0, %1, %cst {dimension_numbers = #tpu.dot_dimension_numbers<[1], [0], [0], [1], [0, 0, 1, 1], [], []>} : vector<2x2048xbf16>, vector<2048x128xbf16>, vector<2x128xf32> -> vector<2x128xf32>
    %c0_3 = arith.constant 0 : index
    %c0_4 = arith.constant 0 : index
    %3 = vector.load %arg3[%c0_3, %c0_4] : memref<1x128xf32, #tpu.memory_space<vmem>>, vector<1x128xf32>
    %4 = vector.broadcast %3 : vector<1x128xf32> to vector<2x128xf32>
    %5 = arith.addf %2, %4 : vector<2x128xf32>
    %cst_5 = arith.constant 0.000000e+00 : f32
    %6 = vector.broadcast %cst_5 : f32 to vector<2x128xf32>
    %7 = arith.maximumf %5, %6 : vector<2x128xf32>
    %c0_6 = arith.constant 0 : index
    %c0_7 = arith.constant 0 : index
    %8 = vector.load %arg4[%c0_6, %c0_7] : memref<128x128xf32, #tpu.memory_space<vmem>>, vector<128x128xf32>
    %cst_8 = arith.constant dense<0.000000e+00> : vector<2x128xf32>
    %9 = tpu.matmul %7, %8, %cst_8 {dimension_numbers = #tpu.dot_dimension_numbers<[1], [0], [0], [1], [0, 0, 1, 1], [], []>} : vector<2x128xf32>, vector<128x128xf32>, vector<2x128xf32> -> vector<2x128xf32>
    %c0_9 = arith.constant 0 : index
    %c0_10 = arith.constant 0 : index
    %10 = vector.load %arg5[%c0_9, %c0_10] : memref<1x128xf32, #tpu.memory_space<vmem>>, vector<1x128xf32>
    %11 = vector.broadcast %10 : vector<1x128xf32> to vector<2x128xf32>
    %12 = arith.addf %9, %11 : vector<2x128xf32>
    %cst_11 = arith.constant dense<0xFF800000> : vector<2xf32>
    %13 = vector.multi_reduction <maximumf>, %12, %cst_11 [1] : vector<2x128xf32> to vector<2xf32>
    %14 = vector.shape_cast %13 : vector<2xf32> to vector<2x1xf32>
    %15 = vector.broadcast %14 : vector<2x1xf32> to vector<2x128xf32>
    %16 = arith.subf %12, %15 : vector<2x128xf32>
    %17 = math.exp %16 : vector<2x128xf32>
    %cst_12 = arith.constant dense<0.000000e+00> : vector<2xf32>
    %18 = vector.multi_reduction <add>, %17, %cst_12 [1] : vector<2x128xf32> to vector<2xf32>
    %19 = vector.shape_cast %18 : vector<2xf32> to vector<2x1xf32>
    %20 = tpu.reciprocal %19 {approx = true} : vector<2x1xf32> -> vector<2x1xf32>
    %21 = vector.broadcast %20 : vector<2x1xf32> to vector<2x128xf32>
    %22 = arith.mulf %17, %21 : vector<2x128xf32>
    %c0_13 = arith.constant 0 : index
    %c0_14 = arith.constant 0 : index
    %23 = vector.load %arg6[%c0_13, %c0_14] : memref<2x128xf32, #tpu.memory_space<vmem>>, vector<2x128xf32>
    tpu.vector_store %arg6[%c0_13, %c0_14], %22 {strides = array<i32>} : memref<2x128xf32, #tpu.memory_space<vmem>>, vector<2x128xf32>,
    return
  }
  func.func @transform_0(%arg0: i32) -> (i32, i32) {
    %c0_i32 = arith.constant 0 : i32
    %c0_i32_0 = arith.constant 0 : i32
    return %arg0, %c0_i32 : i32, i32
  }
  func.func @transform_1(%arg0: i32) -> (i32, i32) {
    %c0_i32 = arith.constant 0 : i32
    %c0_i32_0 = arith.constant 0 : i32
    %c0_i32_1 = arith.constant 0 : i32
    return %c0_i32, %c0_i32_0 : i32, i32
  }
  func.func @transform_2(%arg0: i32) -> (i32, i32) {
    %c0_i32 = arith.constant 0 : i32
    %c0_i32_0 = arith.constant 0 : i32
    %c0_i32_1 = arith.constant 0 : i32
    return %c0_i32, %c0_i32_0 : i32, i32
  }
  func.func @transform_3(%arg0: i32) -> (i32, i32) {
    %c0_i32 = arith.constant 0 : i32
    %c0_i32_0 = arith.constant 0 : i32
    %c0_i32_1 = arith.constant 0 : i32
    return %c0_i32, %c0_i32_0 : i32, i32
  }
  func.func @transform_4(%arg0: i32) -> (i32, i32) {
    %c0_i32 = arith.constant 0 : i32
    %c0_i32_0 = arith.constant 0 : i32
    %c0_i32_1 = arith.constant 0 : i32
    return %c0_i32, %c0_i32_0 : i32, i32
  }
  func.func @transform_5(%arg0: i32) -> (i32, i32) {
    %c0_i32 = arith.constant 0 : i32
    %c0_i32_0 = arith.constant 0 : i32
    return %arg0, %c0_i32 : i32, i32
  }
}

</mosaic_0001>

<llo_original>
// kernel: tpu_custom_call.1
$region0: #{tpu_custom_call.1}
  #allocation0 [shape = 'u32[]', space=smem, size = 0x4, offset = 0x4, fixed_abs, tag = 'smem constant byte address 0x4 - core index']
  #allocation1 [shape = 'u32[144,128]{1,0:T(1,128)}', space=vmem, size = 0x12000, scoped, tag = 'internal scratch']
  %s0 = inlined_call_operand.hbm [shape: bf16[2,2048], index: 0, kind: input, shape index: {}]
  %s1 = inlined_call_operand.hbm [shape: bf16[2048,128], index: 1, kind: input, shape index: {}]
  %s2 = inlined_call_operand.vmem [shape: f32[1,128], index: 2, kind: input, shape index: {}]
  %s3 = inlined_call_operand.hbm [shape: f32[128,128], index: 3, kind: input, shape index: {}]
  %s4 = inlined_call_operand.vmem [shape: f32[1,128], index: 4, kind: input, shape index: {}]
  %s5 = inlined_call_operand.hbm [shape: f32[2,128], index: 5, kind: output, shape index: {}]
  %s6 = sld [smem:[#allocation0]]
  $region42: #{tpu_custom_call.1} parent=0
    _
  %s8 = ssub.s32 1, %s6
  %s9 = scalar_select 0, %s8, %s6
  $region1: #{tpu_custom_call.1} parent=0
    #allocation2 [shape = 'u8[8192]{0}', space=vmem, size = 0x2000, scoped, tag = 'input window, operand 0, single buffered']
    #allocation3 [shape = 's32[1]{0}', space=sflag, size = 0x4, scoped, tag = 'scoped memory for tpu_custom_call.1']
    #allocation4 [shape = 's32[1]{0}', space=sflag, size = 0x4, scoped, tag = 'scoped memory for tpu_custom_call.1']
    #allocation5 [shape = 'u8[524288]{0}', space=vmem, size = 0x80000, scoped, tag = 'input window, operand 1, single buffered']
    #allocation6 [shape = 's32[1]{0}', space=sflag, size = 0x4, scoped, tag = 'scoped memory for tpu_custom_call.1']
    #allocation7 [shape = 'u8[65536]{0}', space=vmem, size = 0x10000, scoped, tag = 'input window, operand 3, single buffered']
    #allocation8 [shape = 'u8[1024]{0}', space=vmem, size = 0x400, scoped, tag = 'output window, operand 0, single buffered']
    %10 = vsyncpa [#allocation3], 0
    %11 = vsyncpa [#allocation6], 0
    %12 = vsyncpa [#allocation4], 0
    // Predicated region
    $region2: #{tpu_custom_call.1} parent=1 // pred_check
      _
    $region3: #{tpu_custom_call.1} parent=1 // pred_check_branch
      %14 = sbr.rel (0) target = $region5
    $region4: #{tpu_custom_call.1} parent=1 // pred_region
      %s16 = ssub.s32 256, 256
      %17 = vsyncadd [#allocation3], %s16
      %s19 = sshll.u32 [#allocation2], 4
      %s20 = int_to_ptr.vmem [resolvable:$true] %s19
      %22 = dma.hbm_to_vmem [thread:$0]  %s0, 256, %s20, [#allocation3]
    $region5: #{tpu_custom_call.1} parent=1 // pred_fallthru
      _
    // Predicated region
    $region6: #{tpu_custom_call.1} parent=1 // pred_check
      _
    $region7: #{tpu_custom_call.1} parent=1 // pred_check_branch
      %24 = sbr.rel (0) target = $region9
    $region8: #{tpu_custom_call.1} parent=1 // pred_region
      %s26 = ssub.s32 16384, 16384
      %27 = vsyncadd [#allocation6], %s26
      %s28 = sshll.u32 [#allocation5], 4
      %s29 = int_to_ptr.vmem [resolvable:$true] %s28
      %34 = dma.hbm_to_vmem [thread:$0]  %s1, 16384, %s29, [#allocation6], 64, 64, 4
    $region9: #{tpu_custom_call.1} parent=1 // pred_fallthru
      _
    // Predicated region
    $region10: #{tpu_custom_call.1} parent=1 // pred_check
      _
    $region11: #{tpu_custom_call.1} parent=1 // pred_check_branch
      %36 = sbr.rel (0) target = $region13
    $region12: #{tpu_custom_call.1} parent=1 // pred_region
      _
    $region13: #{tpu_custom_call.1} parent=1 // pred_fallthru
      _
    // Predicated region
    $region14: #{tpu_custom_call.1} parent=1 // pred_check
      _
    $region15: #{tpu_custom_call.1} parent=1 // pred_check_branch
      %38 = sbr.rel (0) target = $region17
    $region16: #{tpu_custom_call.1} parent=1 // pred_region
      %s40 = ssub.s32 2048, 2048
      %41 = vsyncadd [#allocation6], %s40
      %s42 = sshll.u32 [#allocation7], 4
      %s43 = int_to_ptr.vmem [resolvable:$true] %s42
      %48 = dma.hbm_to_vmem [thread:$0]  %s3, 2048, %s43, [#allocation6], 128, 128, 8
    $region17: #{tpu_custom_call.1} parent=1 // pred_fallthru
      _
    // Predicated region
    $region18: #{tpu_custom_call.1} parent=1 // pred_check
      _
    $region19: #{tpu_custom_call.1} parent=1 // pred_check_branch
      %50 = sbr.rel (0) target = $region21
    $region20: #{tpu_custom_call.1} parent=1 // pred_region
      _
    $region21: #{tpu_custom_call.1} parent=1 // pred_fallthru
      _
    // Predicated region
    $region22: #{tpu_custom_call.1} parent=1 // pred_check
      _
    $region23: #{tpu_custom_call.1} parent=1 // pred_check_branch
      %52 = sbr.rel (0) target = $region25
    $region24: #{tpu_custom_call.1} parent=1 // pred_region
      %53 = dma.done [#allocation3], 256
    $region25: #{tpu_custom_call.1} parent=1 // pred_fallthru
      _
    // Predicated region
    $region26: #{tpu_custom_call.1} parent=1 // pred_check
      _
    $region27: #{tpu_custom_call.1} parent=1 // pred_check_branch
      %55 = sbr.rel (0) target = $region29
    $region28: #{tpu_custom_call.1} parent=1 // pred_region
      %56 = dma.done [#allocation6], 16384
    $region29: #{tpu_custom_call.1} parent=1 // pred_fallthru
      _
    // Predicated region
    $region30: #{tpu_custom_call.1} parent=1 // pred_check
      _
    $region31: #{tpu_custom_call.1} parent=1 // pred_check_branch
      %58 = sbr.rel (0) target = $region33
    $region32: #{tpu_custom_call.1} parent=1 // pred_region
      %59 = dma.done [#allocation6], 2048
    $region33: #{tpu_custom_call.1} parent=1 // pred_fallthru
      _
    %v61 = vld [vmem:[#allocation2] sm:$0xff]
    %v62 = vld [vmem:[#allocation2 + $0x8] sm:$0xff]
    %v63 = vld [vmem:[#allocation5] sm:$0xf]
    %v64 = vld [vmem:[#allocation5 + $0x4] sm:$0xf]
    %v65 = vld [vmem:[#allocation5 + $0x8] sm:$0xf]
    %v66 = vld [vmem:[#allocation5 + $0xc] sm:$0xf]
    %v67 = vld [vmem:[#allocation5 + $0x10] sm:$0xf]
    %v68 = vld [vmem:[#allocation5 + $0x14] sm:$0xf]
    %v69 = vld [vmem:[#allocation5 + $0x18] sm:$0xf]
    %v70 = vld [vmem:[#allocation5 + $0x1c] sm:$0xf]
    %v71 = vld [vmem:[#allocation5 + $0x20] sm:$0xf]
    %v72 = vld [vmem:[#allocation5 + $0x24] sm:$0xf]
    %v73 = vld [vmem:[#allocation5 + $0x28] sm:$0xf]
    %v74 = vld [vmem:[#allocation5 + $0x2c] sm:$0xf]
    %v75 = vld [vmem:[#allocation5 + $0x30] sm:$0xf]
    %v76 = vld [vmem:[#allocation5 + $0x34] sm:$0xf]
    %v77 = vld [vmem:[#allocation5 + $0x38] sm:$0xf]
    %v78 = vld [vmem:[#allocation5 + $0x3c] sm:$0xf]
    %v79 = vld [vmem:[#allocation5 + $0x40] sm:$0xf]
    %v80 = vld [vmem:[#allocation5 + $0x44] sm:$0xf]
    %v81 = vld [vmem:[#allocation5 + $0x48] sm:$0xf]
    %v82 = vld [vmem:[#allocation5 + $0x4c] sm:$0xf]
    %v83 = vld [vmem:[#allocation5 + $0x50] sm:$0xf]
    %v84 = vld [vmem:[#allocation5 + $0x54] sm:$0xf]
    %v85 = vld [vmem:[#allocation5 + $0x58] sm:$0xf]
    %v86 = vld [vmem:[#allocation5 + $0x5c] sm:$0xf]
    %v87 = vld [vmem:[#allocation5 + $0x60] sm:$0xf]
    %v88 = vld [vmem:[#allocation5 + $0x64] sm:$0xf]
    %v89 = vld [vmem:[#allocation5 + $0x68] sm:$0xf]
    %v90 = vld [vmem:[#allocation5 + $0x6c] sm:$0xf]
    %v91 = vld [vmem:[#allocation5 + $0x70] sm:$0xf]
    %v92 = vld [vmem:[#allocation5 + $0x74] sm:$0xf]
    %v93 = vld [vmem:[#allocation5 + $0x78] sm:$0xf]
    %v94 = vld [vmem:[#allocation5 + $0x7c] sm:$0xf]
    %v95 = vld [vmem:[#allocation5 + $0x80] sm:$0xf]
    %v96 = vld [vmem:[#allocation5 + $0x84] sm:$0xf]
    %v97 = vld [vmem:[#allocation5 + $0x88] sm:$0xf]
    %v98 = vld [vmem:[#allocation5 + $0x8c] sm:$0xf]
    %v99 = vld [vmem:[#allocation5 + $0x90] sm:$0xf]
    %v100 = vld [vmem:[#allocation5 + $0x94] sm:$0xf]
    %v101 = vld [vmem:[#allocation5 + $0x98] sm:$0xf]
    %v102 = vld [vmem:[#allocation5 + $0x9c] sm:$0xf]
    %v103 = vld [vmem:[#allocation5 + $0xa0] sm:$0xf]
    %v104 = vld [vmem:[#allocation5 + $0xa4] sm:$0xf]
    %v105 = vld [vmem:[#allocation5 + $0xa8] sm:$0xf]
    %v106 = vld [vmem:[#allocation5 + $0xac] sm:$0xf]
    %v107 = vld [vmem:[#allocation5 + $0xb0] sm:$0xf]
    %v108 = vld [vmem:[#allocation5 + $0xb4] sm:$0xf]
    %v109 = vld [vmem:[#allocation5 + $0xb8] sm:$0xf]
    %v110 = vld [vmem:[#allocation5 + $0xbc] sm:$0xf]
    %v111 = vld [vmem:[#allocation5 + $0xc0] sm:$0xf]
    %v112 = vld [vmem:[#allocation5 + $0xc4] sm:$0xf]
    %v113 = vld [vmem:[#allocation5 + $0xc8] sm:$0xf]
    %v114 = vld [vmem:[#allocation5 + $0xcc] sm:$0xf]
    %v115 = vld [vmem:[#allocation5 + $0xd0] sm:$0xf]
    %v116 = vld [vmem:[#allocation5 + $0xd4] sm:$0xf]
    %v117 = vld [vmem:[#allocation5 + $0xd8] sm:$0xf]
    %v118 = vld [vmem:[#allocation5 + $0xdc] sm:$0xf]
    %v119 = vld [vmem:[#allocation5 + $0xe0] sm:$0xf]
    %v120 = vld [vmem:[#allocation5 + $0xe4] sm:$0xf]
    %v121 = vld [vmem:[#allocation5 + $0xe8] sm:$0xf]
    %v122 = vld [vmem:[#allocation5 + $0xec] sm:$0xf]
    %v123 = vld [vmem:[#allocation5 + $0xf0] sm:$0xf]
    %v124 = vld [vmem:[#allocation5 + $0xf4] sm:$0xf]
    %v125 = vld [vmem:[#allocation5 + $0xf8] sm:$0xf]
    %v126 = vld [vmem:[#allocation5 + $0xfc] sm:$0xf]
    %v127 = vld [vmem:[#allocation5 + $0x100] sm:$0xf]
    %v128 = vld [vmem:[#allocation5 + $0x104] sm:$0xf]
    %v129 = vld [vmem:[#allocation5 + $0x108] sm:$0xf]
    %v130 = vld [vmem:[#allocation5 + $0x10c] sm:$0xf]
    %v131 = vld [vmem:[#allocation5 + $0x110] sm:$0xf]
    %v132 = vld [vmem:[#allocation5 + $0x114] sm:$0xf]
    %v133 = vld [vmem:[#allocation5 + $0x118] sm:$0xf]
    %v134 = vld [vmem:[#allocation5 + $0x11c] sm:$0xf]
    %v135 = vld [vmem:[#allocation5 + $0x120] sm:$0xf]
    %v136 = vld [vmem:[#allocation5 + $0x124] sm:$0xf]
    %v137 = vld [vmem:[#allocation5 + $0x128] sm:$0xf]
    %v138 = vld [vmem:[#allocation5 + $0x12c] sm:$0xf]
    %v139 = vld [vmem:[#allocation5 + $0x130] sm:$0xf]
    %v140 = vld [vmem:[#allocation5 + $0x134] sm:$0xf]
    %v141 = vld [vmem:[#allocation5 + $0x138] sm:$0xf]
    %v142 = vld [vmem:[#allocation5 + $0x13c] sm:$0xf]
    %v143 = vld [vmem:[#allocation5 + $0x140] sm:$0xf]
    %v144 = vld [vmem:[#allocation5 + $0x144] sm:$0xf]
    %v145 = vld [vmem:[#allocation5 + $0x148] sm:$0xf]
    %v146 = vld [vmem:[#allocation5 + $0x14c] sm:$0xf]
    %v147 = vld [vmem:[#allocation5 + $0x150] sm:$0xf]
    %v148 = vld [vmem:[#allocation5 + $0x154] sm:$0xf]
    %v149 = vld [vmem:[#allocation5 + $0x158] sm:$0xf]
    %v150 = vld [vmem:[#allocation5 + $0x15c] sm:$0xf]
    %v151 = vld [vmem:[#allocation5 + $0x160] sm:$0xf]
    %v152 = vld [vmem:[#allocation5 + $0x164] sm:$0xf]
    %v153 = vld [vmem:[#allocation5 + $0x168] sm:$0xf]
    %v154 = vld [vmem:[#allocation5 + $0x16c] sm:$0xf]
    %v155 = vld [vmem:[#allocation5 + $0x170] sm:$0xf]
    %v156 = vld [vmem:[#allocation5 + $0x174] sm:$0xf]
    %v157 = vld [vmem:[#allocation5 + $0x178] sm:$0xf]
    %v158 = vld [vmem:[#allocation5 + $0x17c] sm:$0xf]
    %v159 = vld [vmem:[#allocation5 + $0x180] sm:$0xf]
    %v160 = vld [vmem:[#allocation5 + $0x184] sm:$0xf]
    %v161 = vld [vmem:[#allocation5 + $0x188] sm:$0xf]
    %v162 = vld [vmem:[#allocation5 + $0x18c] sm:$0xf]
    %v163 = vld [vmem:[#allocation5 + $0x190] sm:$0xf]
    %v164 = vld [vmem:[#allocation5 + $0x194] sm:$0xf]
    %v165 = vld [vmem:[#allocation5 + $0x198] sm:$0xf]
    %v166 = vld [vmem:[#allocation5 + $0x19c] sm:$0xf]
    %v167 = vld [vmem:[#allocation5 + $0x1a0] sm:$0xf]
    %v168 = vld [vmem:[#allocation5 + $0x1a4] sm:$0xf]
    %v169 = vld [vmem:[#allocation5 + $0x1a8] sm:$0xf]
    %v170 = vld [vmem:[#allocation5 + $0x1ac] sm:$0xf]
    %v171 = vld [vmem:[#allocation5 + $0x1b0] sm:$0xf]
    %v172 = vld [vmem:[#allocation5 + $0x1b4] sm:$0xf]
    %v173 = vld [vmem:[#allocation5 + $0x1b8] sm:$0xf]
    %v174 = vld [vmem:[#allocation5 + $0x1bc] sm:$0xf]
    %v175 = vld [vmem:[#allocation5 + $0x1c0] sm:$0xf]
    %v176 = vld [vmem:[#allocation5 + $0x1c4] sm:$0xf]
    %v177 = vld [vmem:[#allocation5 + $0x1c8] sm:$0xf]
    %v178 = vld [vmem:[#allocation5 + $0x1cc] sm:$0xf]
    %v179 = vld [vmem:[#allocation5 + $0x1d0] sm:$0xf]
    %v180 = vld [vmem:[#allocation5 + $0x1d4] sm:$0xf]
    %v181 = vld [vmem:[#allocation5 + $0x1d8] sm:$0xf]
    %v182 = vld [vmem:[#allocation5 + $0x1dc] sm:$0xf]
    %v183 = vld [vmem:[#allocation5 + $0x1e0] sm:$0xf]
    %v184 = vld [vmem:[#allocation5 + $0x1e4] sm:$0xf]
    %v185 = vld [vmem:[#allocation5 + $0x1e8] sm:$0xf]
    %v186 = vld [vmem:[#allocation5 + $0x1ec] sm:$0xf]
    %v187 = vld [vmem:[#allocation5 + $0x1f0] sm:$0xf]
    %v188 = vld [vmem:[#allocation5 + $0x1f4] sm:$0xf]
    %v189 = vld [vmem:[#allocation5 + $0x1f8] sm:$0xf]
    %v190 = vld [vmem:[#allocation5 + $0x1fc] sm:$0xf]
    %v191 = vld [vmem:[#allocation5 + $0x200] sm:$0xf]
    %v192 = vld [vmem:[#allocation5 + $0x204] sm:$0xf]
    %v193 = vld [vmem:[#allocation5 + $0x208] sm:$0xf]
    %v194 = vld [vmem:[#allocation5 + $0x20c] sm:$0xf]
    %v195 = vld [vmem:[#allocation5 + $0x210] sm:$0xf]
    %v196 = vld [vmem:[#allocation5 + $0x214] sm:$0xf]
    %v197 = vld [vmem:[#allocation5 + $0x218] sm:$0xf]
    %v198 = vld [vmem:[#allocation5 + $0x21c] sm:$0xf]
    %v199 = vld [vmem:[#allocation5 + $0x220] sm:$0xf]
    %v200 = vld [vmem:[#allocation5 + $0x224] sm:$0xf]
    %v201 = vld [vmem:[#allocation5 + $0x228] sm:$0xf]
    %v202 = vld [vmem:[#allocation5 + $0x22c] sm:$0xf]
    %v203 = vld [vmem:[#allocation5 + $0x230] sm:$0xf]
    %v204 = vld [vmem:[#allocation5 + $0x234] sm:$0xf]
    %v205 = vld [vmem:[#allocation5 + $0x238] sm:$0xf]
    %v206 = vld [vmem:[#allocation5 + $0x23c] sm:$0xf]
    %v207 = vld [vmem:[#allocation5 + $0x240] sm:$0xf]
    %v208 = vld [vmem:[#allocation5 + $0x244] sm:$0xf]
    %v209 = vld [vmem:[#allocation5 + $0x248] sm:$0xf]
    %v210 = vld [vmem:[#allocation5 + $0x24c] sm:$0xf]
    %v211 = vld [vmem:[#allocation5 + $0x250] sm:$0xf]
    %v212 = vld [vmem:[#allocation5 + $0x254] sm:$0xf]
    %v213 = vld [vmem:[#allocation5 + $0x258] sm:$0xf]
    %v214 = vld [vmem:[#allocation5 + $0x25c] sm:$0xf]
    %v215 = vld [vmem:[#allocation5 + $0x260] sm:$0xf]
    %v216 = vld [vmem:[#allocation5 + $0x264] sm:$0xf]
    %v217 = vld [vmem:[#allocation5 + $0x268] sm:$0xf]
    %v218 = vld [vmem:[#allocation5 + $0x26c] sm:$0xf]
    %v219 = vld [vmem:[#allocation5 + $0x270] sm:$0xf]
    %v220 = vld [vmem:[#allocation5 + $0x274] sm:$0xf]
    %v221 = vld [vmem:[#allocation5 + $0x278] sm:$0xf]
    %v222 = vld [vmem:[#allocation5 + $0x27c] sm:$0xf]
    %v223 = vld [vmem:[#allocation5 + $0x280] sm:$0xf]
    %v224 = vld [vmem:[#allocation5 + $0x284] sm:$0xf]
    %v225 = vld [vmem:[#allocation5 + $0x288] sm:$0xf]
    %v226 = vld [vmem:[#allocation5 + $0x28c] sm:$0xf]
    %v227 = vld [vmem:[#allocation5 + $0x290] sm:$0xf]
    %v228 = vld [vmem:[#allocation5 + $0x294] sm:$0xf]
    %v229 = vld [vmem:[#allocation5 + $0x298] sm:$0xf]
    %v230 = vld [vmem:[#allocation5 + $0x29c] sm:$0xf]
    %v231 = vld [vmem:[#allocation5 + $0x2a0] sm:$0xf]
    %v232 = vld [vmem:[#allocation5 + $0x2a4] sm:$0xf]
    %v233 = vld [vmem:[#allocation5 + $0x2a8] sm:$0xf]
    %v234 = vld [vmem:[#allocation5 + $0x2ac] sm:$0xf]
    %v235 = vld [vmem:[#allocation5 + $0x2b0] sm:$0xf]
    %v236 = vld [vmem:[#allocation5 + $0x2b4] sm:$0xf]
    %v237 = vld [vmem:[#allocation5 + $0x2b8] sm:$0xf]
    %v238 = vld [vmem:[#allocation5 + $0x2bc] sm:$0xf]
    %v239 = vld [vmem:[#allocation5 + $0x2c0] sm:$0xf]
    %v240 = vld [vmem:[#allocation5 + $0x2c4] sm:$0xf]
    %v241 = vld [vmem:[#allocation5 + $0x2c8] sm:$0xf]
    %v242 = vld [vmem:[#allocation5 + $0x2cc] sm:$0xf]
    %v243 = vld [vmem:[#allocation5 + $0x2d0] sm:$0xf]
    %v244 = vld [vmem:[#allocation5 + $0x2d4] sm:$0xf]
    %v245 = vld [vmem:[#allocation5 + $0x2d8] sm:$0xf]
    %v246 = vld [vmem:[#allocation5 + $0x2dc] sm:$0xf]
    %v247 = vld [vmem:[#allocation5 + $0x2e0] sm:$0xf]
    %v248 = vld [vmem:[#allocation5 + $0x2e4] sm:$0xf]
    %v249 = vld [vmem:[#allocation5 + $0x2e8] sm:$0xf]
    %v250 = vld [vmem:[#allocation5 + $0x2ec] sm:$0xf]
    %v251 = vld [vmem:[#allocation5 + $0x2f0] sm:$0xf]
    %v252 = vld [vmem:[#allocation5 + $0x2f4] sm:$0xf]
    %v253 = vld [vmem:[#allocation5 + $0x2f8] sm:$0xf]
    %v254 = vld [vmem:[#allocation5 + $0x2fc] sm:$0xf]
    %v255 = vld [vmem:[#allocation5 + $0x300] sm:$0xf]
    %v256 = vld [vmem:[#allocation5 + $0x304] sm:$0xf]
    %v257 = vld [vmem:[#allocation5 + $0x308] sm:$0xf]
    %v258 = vld [vmem:[#allocation5 + $0x30c] sm:$0xf]
    %v259 = vld [vmem:[#allocation5 + $0x310] sm:$0xf]
    %v260 = vld [vmem:[#allocation5 + $0x314] sm:$0xf]
    %v261 = vld [vmem:[#allocation5 + $0x318] sm:$0xf]
    %v262 = vld [vmem:[#allocation5 + $0x31c] sm:$0xf]
    %v263 = vld [vmem:[#allocation5 + $0x320] sm:$0xf]
    %v264 = vld [vmem:[#allocation5 + $0x324] sm:$0xf]
    %v265 = vld [vmem:[#allocation5 + $0x328] sm:$0xf]
    %v266 = vld [vmem:[#allocation5 + $0x32c] sm:$0xf]
    %v267 = vld [vmem:[#allocation5 + $0x330] sm:$0xf]
    %v268 = vld [vmem:[#allocation5 + $0x334] sm:$0xf]
    %v269 = vld [vmem:[#allocation5 + $0x338] sm:$0xf]
    %v270 = vld [vmem:[#allocation5 + $0x33c] sm:$0xf]
    %v271 = vld [vmem:[#allocation5 + $0x340] sm:$0xf]
    %v272 = vld [vmem:[#allocation5 + $0x344] sm:$0xf]
    %v273 = vld [vmem:[#allocation5 + $0x348] sm:$0xf]
    %v274 = vld [vmem:[#allocation5 + $0x34c] sm:$0xf]
    %v275 = vld [vmem:[#allocation5 + $0x350] sm:$0xf]
    %v276 = vld [vmem:[#allocation5 + $0x354] sm:$0xf]
    %v277 = vld [vmem:[#allocation5 + $0x358] sm:$0xf]
    %v278 = vld [vmem:[#allocation5 + $0x35c] sm:$0xf]
    %v279 = vld [vmem:[#allocation5 + $0x360] sm:$0xf]
    %v280 = vld [vmem:[#allocation5 + $0x364] sm:$0xf]
    %v281 = vld [vmem:[#allocation5 + $0x368] sm:$0xf]
    %v282 = vld [vmem:[#allocation5 + $0x36c] sm:$0xf]
    %v283 = vld [vmem:[#allocation5 + $0x370] sm:$0xf]
    %v284 = vld [vmem:[#allocation5 + $0x374] sm:$0xf]
    %v285 = vld [vmem:[#allocation5 + $0x378] sm:$0xf]
    %v286 = vld [vmem:[#allocation5 + $0x37c] sm:$0xf]
    %v287 = vld [vmem:[#allocation5 + $0x380] sm:$0xf]
    %v288 = vld [vmem:[#allocation5 + $0x384] sm:$0xf]
    %v289 = vld [vmem:[#allocation5 + $0x388] sm:$0xf]
    %v290 = vld [vmem:[#allocation5 + $0x38c] sm:$0xf]
    %v291 = vld [vmem:[#allocation5 + $0x390] sm:$0xf]
    %v292 = vld [vmem:[#allocation5 + $0x394] sm:$0xf]
    %v293 = vld [vmem:[#allocation5 + $0x398] sm:$0xf]
    %v294 = vld [vmem:[#allocation5 + $0x39c] sm:$0xf]
    %v295 = vld [vmem:[#allocation5 + $0x3a0] sm:$0xf]
    %v296 = vld [vmem:[#allocation5 + $0x3a4] sm:$0xf]
    %v297 = vld [vmem:[#allocation5 + $0x3a8] sm:$0xf]
    %v298 = vld [vmem:[#allocation5 + $0x3ac] sm:$0xf]
    %v299 = vld [vmem:[#allocation5 + $0x3b0] sm:$0xf]
    %v300 = vld [vmem:[#allocation5 + $0x3b4] sm:$0xf]
    %v301 = vld [vmem:[#allocation5 + $0x3b8] sm:$0xf]
    %v302 = vld [vmem:[#allocation5 + $0x3bc] sm:$0xf]
    %v303 = vld [vmem:[#allocation5 + $0x3c0] sm:$0xf]
    %v304 = vld [vmem:[#allocation5 + $0x3c4] sm:$0xf]
    %v305 = vld [vmem:[#allocation5 + $0x3c8] sm:$0xf]
    %v306 = vld [vmem:[#allocation5 + $0x3cc] sm:$0xf]
    %v307 = vld [vmem:[#allocation5 + $0x3d0] sm:$0xf]
    %v308 = vld [vmem:[#allocation5 + $0x3d4] sm:$0xf]
    %v309 = vld [vmem:[#allocation5 + $0x3d8] sm:$0xf]
    %v310 = vld [vmem:[#allocation5 + $0x3dc] sm:$0xf]
    %v311 = vld [vmem:[#allocation5 + $0x3e0] sm:$0xf]
    %v312 = vld [vmem:[#allocation5 + $0x3e4] sm:$0xf]
    %v313 = vld [vmem:[#allocation5 + $0x3e8] sm:$0xf]
    %v314 = vld [vmem:[#allocation5 + $0x3ec] sm:$0xf]
    %v315 = vld [vmem:[#allocation5 + $0x3f0] sm:$0xf]
    %v316 = vld [vmem:[#allocation5 + $0x3f4] sm:$0xf]
    %v317 = vld [vmem:[#allocation5 + $0x3f8] sm:$0xf]
    %v318 = vld [vmem:[#allocation5 + $0x3fc] sm:$0xf]
    %v319 = vld [vmem:[%s2] sm:$0x1]
    %v321 = vlaneseq
    %v322 = vshrl.u32 %v321, 7
    %v323 = vsub.s32 0, %v322
    %v324 = vrot.slane %v319, %v323
    %v328 = vcombine.high %v61, %v61
    %v330 = vunpack.c.l.s4 1966171168
    %v331 = vunpack.c.0.s8 %v330
    %v332 = vlaneseq
    %v333 = vshrl.u32 %v332, 7
    %v334 = vsub.s32 %v331, %v333
    %v335 = vrot.slane %v61, %v334
    %v337 = vunpack.c.l.s4 1966171168
    %v338 = vunpack.c.0.s8 %v337
    %v339 = vlaneseq
    %v340 = vshrl.u32 %v339, 7
    %v341 = vsub.s32 %v338, %v340
    %v342 = vrot.slane %v328, %v341
    %v343 = vcombine.high %v335, %v335
    %v344 = vcombine.high %v342, %v342
    %v346 = vunpack.c.l.s4 1966171168
    %v347 = vunpack.c.0.s8 %v346
    %v348 = vlaneseq
    %v349 = vshrl.u32 %v348, 7
    %v350 = vsub.s32 %v347, %v349
    %v351 = vrot.slane %v335, %v350
    %v353 = vunpack.c.l.s4 1966171168
    %v354 = vunpack.c.0.s8 %v353
    %v355 = vlaneseq
    %v356 = vshrl.u32 %v355, 7
    %v357 = vsub.s32 %v354, %v356
    %v358 = vrot.slane %v342, %v357
    %v360 = vunpack.c.l.s4 1966171168
    %v361 = vunpack.c.0.s8 %v360
    %v362 = vlaneseq
    %v363 = vshrl.u32 %v362, 7
    %v364 = vsub.s32 %v361, %v363
    %v365 = vrot.slane %v343, %v364
    %v367 = vunpack.c.l.s4 1966171168
    %v368 = vunpack.c.0.s8 %v367
    %v369 = vlaneseq
    %v370 = vshrl.u32 %v369, 7
    %v371 = vsub.s32 %v368, %v370
    %v372 = vrot.slane %v344, %v371
    %v373 = vcombine.high %v351, %v351
    %v374 = vcombine.high %v358, %v358
    %v375 = vcombine.high %v365, %v365
    %v376 = vcombine.high %v372, %v372
    %v377 = vcombine.high %v62, %v62
    %v379 = vunpack.c.l.s4 1966171168
    %v380 = vunpack.c.0.s8 %v379
    %v381 = vlaneseq
    %v382 = vshrl.u32 %v381, 7
    %v383 = vsub.s32 %v380, %v382
    %v384 = vrot.slane %v62, %v383
    %v386 = vunpack.c.l.s4 1966171168
    %v387 = vunpack.c.0.s8 %v386
    %v388 = vlaneseq
    %v389 = vshrl.u32 %v388, 7
    %v390 = vsub.s32 %v387, %v389
    %v391 = vrot.slane %v377, %v390
    %v392 = vcombine.high %v384, %v384
    %v393 = vcombine.high %v391, %v391
    %v395 = vunpack.c.l.s4 1966171168
    %v396 = vunpack.c.0.s8 %v395
    %v397 = vlaneseq
    %v398 = vshrl.u32 %v397, 7
    %v399 = vsub.s32 %v396, %v398
    %v400 = vrot.slane %v384, %v399
    %v402 = vunpack.c.l.s4 1966171168
    %v403 = vunpack.c.0.s8 %v402
    %v404 = vlaneseq
    %v405 = vshrl.u32 %v404, 7
    %v406 = vsub.s32 %v403, %v405
    %v407 = vrot.slane %v391, %v406
    %v409 = vunpack.c.l.s4 1966171168
    %v410 = vunpack.c.0.s8 %v409
    %v411 = vlaneseq
    %v412 = vshrl.u32 %v411, 7
    %v413 = vsub.s32 %v410, %v412
    %v414 = vrot.slane %v392, %v413
    %v416 = vunpack.c.l.s4 1966171168
    %v417 = vunpack.c.0.s8 %v416
    %v418 = vlaneseq
    %v419 = vshrl.u32 %v418, 7
    %v420 = vsub.s32 %v417, %v419
    %v421 = vrot.slane %v393, %v420
    %v422 = vcombine.high %v400, %v400
    %v423 = vcombine.high %v407, %v407
    %v424 = vcombine.high %v414, %v414
    %v425 = vcombine.high %v421, %v421
    %v698 = vunpack.c.l.b16 %v63
    %v699 = vunpack.c.l.b16 %v64
    %v700 = vunpack.c.l.b16 %v65
    %v701 = vunpack.c.l.b16 %v66
    %v702 = vunpack.c.l.b16 %v67
    %v703 = vunpack.c.l.b16 %v68
    %v704 = vunpack.c.l.b16 %v69
    %v705 = vunpack.c.l.b16 %v70
    %v706 = vunpack.c.l.b16 %v71
    %v707 = vunpack.c.l.b16 %v72
    %v708 = vunpack.c.l.b16 %v73
    %v709 = vunpack.c.l.b16 %v74
    %v710 = vunpack.c.l.b16 %v75
    %v711 = vunpack.c.l.b16 %v76
    %v712 = vunpack.c.l.b16 %v77
    %v713 = vunpack.c.l.b16 %v78
    %v714 = vunpack.c.l.b16 %v79
    %v715 = vunpack.c.l.b16 %v80
    %v716 = vunpack.c.l.b16 %v81
    %v717 = vunpack.c.l.b16 %v82
    %v718 = vunpack.c.l.b16 %v83
    %v719 = vunpack.c.l.b16 %v84
    %v720 = vunpack.c.l.b16 %v85
    %v721 = vunpack.c.l.b16 %v86
    %v722 = vunpack.c.l.b16 %v87
    %v723 = vunpack.c.l.b16 %v88
    %v724 = vunpack.c.l.b16 %v89
    %v725 = vunpack.c.l.b16 %v90
    %v726 = vunpack.c.l.b16 %v91
    %v727 = vunpack.c.l.b16 %v92
    %v728 = vunpack.c.l.b16 %v93
    %v729 = vunpack.c.l.b16 %v94
    %v730 = vunpack.c.l.b16 %v95
    %v731 = vunpack.c.l.b16 %v96
    %v732 = vunpack.c.l.b16 %v97
    %v733 = vunpack.c.l.b16 %v98
    %v734 = vunpack.c.l.b16 %v99
    %v735 = vunpack.c.l.b16 %v100
    %v736 = vunpack.c.l.b16 %v101
    %v737 = vunpack.c.l.b16 %v102
    %v738 = vunpack.c.l.b16 %v103
    %v739 = vunpack.c.l.b16 %v104
    %v740 = vunpack.c.l.b16 %v105
    %v741 = vunpack.c.l.b16 %v106
    %v742 = vunpack.c.l.b16 %v107
    %v743 = vunpack.c.l.b16 %v108
    %v744 = vunpack.c.l.b16 %v109
    %v745 = vunpack.c.l.b16 %v110
    %v746 = vunpack.c.l.b16 %v111
    %v747 = vunpack.c.l.b16 %v112
    %v748 = vunpack.c.l.b16 %v113
    %v749 = vunpack.c.l.b16 %v114
    %v750 = vunpack.c.l.b16 %v115
    %v751 = vunpack.c.l.b16 %v116
    %v752 = vunpack.c.l.b16 %v117
    %v753 = vunpack.c.l.b16 %v118
    %v754 = vunpack.c.l.b16 %v119
    %v755 = vunpack.c.l.b16 %v120
    %v756 = vunpack.c.l.b16 %v121
    %v757 = vunpack.c.l.b16 %v122
    %v758 = vunpack.c.l.b16 %v123
    %v759 = vunpack.c.l.b16 %v124
    %v760 = vunpack.c.l.b16 %v125
    %v761 = vunpack.c.l.b16 %v126
    %v762 = vunpack.c.l.b16 %v127
    %v763 = vunpack.c.l.b16 %v128
    %v764 = vunpack.c.l.b16 %v129
    %v765 = vunpack.c.l.b16 %v130
    %v766 = vunpack.c.l.b16 %v131
    %v767 = vunpack.c.l.b16 %v132
    %v768 = vunpack.c.l.b16 %v133
    %v769 = vunpack.c.l.b16 %v134
    %v770 = vunpack.c.l.b16 %v135
    %v771 = vunpack.c.l.b16 %v136
    %v772 = vunpack.c.l.b16 %v137
    %v773 = vunpack.c.l.b16 %v138
    %v774 = vunpack.c.l.b16 %v139
    %v775 = vunpack.c.l.b16 %v140
    %v776 = vunpack.c.l.b16 %v141
    %v777 = vunpack.c.l.b16 %v142
    %v778 = vunpack.c.l.b16 %v143
    %v779 = vunpack.c.l.b16 %v144
    %v780 = vunpack.c.l.b16 %v145
    %v781 = vunpack.c.l.b16 %v146
    %v782 = vunpack.c.l.b16 %v147
    %v783 = vunpack.c.l.b16 %v148
    %v784 = vunpack.c.l.b16 %v149
    %v785 = vunpack.c.l.b16 %v150
    %v786 = vunpack.c.l.b16 %v151
    %v787 = vunpack.c.l.b16 %v152
    %v788 = vunpack.c.l.b16 %v153
    %v789 = vunpack.c.l.b16 %v154
    %v790 = vunpack.c.l.b16 %v155
    %v791 = vunpack.c.l.b16 %v156
    %v792 = vunpack.c.l.b16 %v157
    %v793 = vunpack.c.l.b16 %v158
    %v794 = vunpack.c.l.b16 %v159
    %v795 = vunpack.c.l.b16 %v160
    %v796 = vunpack.c.l.b16 %v161
    %v797 = vunpack.c.l.b16 %v162
    %v798 = vunpack.c.l.b16 %v163
    %v799 = vunpack.c.l.b16 %v164
    %v800 = vunpack.c.l.b16 %v165
    %v801 = vunpack.c.l.b16 %v166
    %v802 = vunpack.c.l.b16 %v167
    %v803 = vunpack.c.l.b16 %v168
    %v804 = vunpack.c.l.b16 %v169
    %v805 = vunpack.c.l.b16 %v170
    %v806 = vunpack.c.l.b16 %v171
    %v807 = vunpack.c.l.b16 %v172
    %v808 = vunpack.c.l.b16 %v173
    %v809 = vunpack.c.l.b16 %v174
    %v810 = vunpack.c.l.b16 %v175
    %v811 = vunpack.c.l.b16 %v176
    %v812 = vunpack.c.l.b16 %v177
    %v813 = vunpack.c.l.b16 %v178
    %v814 = vunpack.c.l.b16 %v179
    %v815 = vunpack.c.l.b16 %v180
    %v816 = vunpack.c.l.b16 %v181
    %v817 = vunpack.c.l.b16 %v182
    %v818 = vunpack.c.l.b16 %v183
    %v819 = vunpack.c.l.b16 %v184
    %v820 = vunpack.c.l.b16 %v185
    %v821 = vunpack.c.l.b16 %v186
    %v822 = vunpack.c.l.b16 %v187
    %v823 = vunpack.c.l.b16 %v188
    %v824 = vunpack.c.l.b16 %v189
    %v825 = vunpack.c.l.b16 %v190
    %v826 = vunpack.c.l.b16 %v191
    %v827 = vunpack.c.l.b16 %v192
    %v828 = vunpack.c.l.b16 %v193
    %v829 = vunpack.c.l.b16 %v194
    %v830 = vunpack.c.l.b16 %v195
    %v831 = vunpack.c.l.b16 %v196
    %v832 = vunpack.c.l.b16 %v197
    %v833 = vunpack.c.l.b16 %v198
    %v834 = vunpack.c.l.b16 %v199
    %v835 = vunpack.c.l.b16 %v200
    %v836 = vunpack.c.l.b16 %v201
    %v837 = vunpack.c.l.b16 %v202
    %v838 = vunpack.c.l.b16 %v203
    %v839 = vunpack.c.l.b16 %v204
    %v840 = vunpack.c.l.b16 %v205
    %v841 = vunpack.c.l.b16 %v206
    %v842 = vunpack.c.l.b16 %v207
    %v843 = vunpack.c.l.b16 %v208
    %v844 = vunpack.c.l.b16 %v209
    %v845 = vunpack.c.l.b16 %v210
    %v846 = vunpack.c.l.b16 %v211
    %v847 = vunpack.c.l.b16 %v212
    %v848 = vunpack.c.l.b16 %v213
    %v849 = vunpack.c.l.b16 %v214
    %v850 = vunpack.c.l.b16 %v215
    %v851 = vunpack.c.l.b16 %v216
    %v852 = vunpack.c.l.b16 %v217
    %v853 = vunpack.c.l.b16 %v218
    %v854 = vunpack.c.l.b16 %v219
    %v855 = vunpack.c.l.b16 %v220
    %v856 = vunpack.c.l.b16 %v221
    %v857 = vunpack.c.l.b16 %v222
    %v858 = vunpack.c.l.b16 %v223
    %v859 = vunpack.c.l.b16 %v224
    %v860 = vunpack.c.l.b16 %v225
    %v861 = vunpack.c.l.b16 %v226
    %v862 = vunpack.c.l.b16 %v227
    %v863 = vunpack.c.l.b16 %v228
    %v864 = vunpack.c.l.b16 %v229
    %v865 = vunpack.c.l.b16 %v230
    %v866 = vunpack.c.l.b16 %v231
    %v867 = vunpack.c.l.b16 %v232
    %v868 = vunpack.c.l.b16 %v233
    %v869 = vunpack.c.l.b16 %v234
    %v870 = vunpack.c.l.b16 %v235
    %v871 = vunpack.c.l.b16 %v236
    %v872 = vunpack.c.l.b16 %v237
    %v873 = vunpack.c.l.b16 %v238
    %v874 = vunpack.c.l.b16 %v239
    %v875 = vunpack.c.l.b16 %v240
    %v876 = vunpack.c.l.b16 %v241
    %v877 = vunpack.c.l.b16 %v242
    %v878 = vunpack.c.l.b16 %v243
    %v879 = vunpack.c.l.b16 %v244
    %v880 = vunpack.c.l.b16 %v245
    %v881 = vunpack.c.l.b16 %v246
    %v882 = vunpack.c.l.b16 %v247
    %v883 = vunpack.c.l.b16 %v248
    %v884 = vunpack.c.l.b16 %v249
    %v885 = vunpack.c.l.b16 %v250
    %v886 = vunpack.c.l.b16 %v251
    %v887 = vunpack.c.l.b16 %v252
    %v888 = vunpack.c.l.b16 %v253
    %v889 = vunpack.c.l.b16 %v254
    %v890 = vunpack.c.l.b16 %v255
    %v891 = vunpack.c.l.b16 %v256
    %v892 = vunpack.c.l.b16 %v257
    %v893 = vunpack.c.l.b16 %v258
    %v894 = vunpack.c.l.b16 %v259
    %v895 = vunpack.c.l.b16 %v260
    %v896 = vunpack.c.l.b16 %v261
    %v897 = vunpack.c.l.b16 %v262
    %v898 = vunpack.c.l.b16 %v263
    %v899 = vunpack.c.l.b16 %v264
    %v900 = vunpack.c.l.b16 %v265
    %v901 = vunpack.c.l.b16 %v266
    %v902 = vunpack.c.l.b16 %v267
    %v903 = vunpack.c.l.b16 %v268
    %v904 = vunpack.c.l.b16 %v269
    %v905 = vunpack.c.l.b16 %v270
    %v906 = vunpack.c.l.b16 %v271
    %v907 = vunpack.c.l.b16 %v272
    %v908 = vunpack.c.l.b16 %v273
    %v909 = vunpack.c.l.b16 %v274
    %v910 = vunpack.c.l.b16 %v275
    %v911 = vunpack.c.l.b16 %v276
    %v912 = vunpack.c.l.b16 %v277
    %v913 = vunpack.c.l.b16 %v278
    %v914 = vunpack.c.l.b16 %v279
    %v915 = vunpack.c.l.b16 %v280
    %v916 = vunpack.c.l.b16 %v281
    %v917 = vunpack.c.l.b16 %v282
    %v918 = vunpack.c.l.b16 %v283
    %v919 = vunpack.c.l.b16 %v284
    %v920 = vunpack.c.l.b16 %v285
    %v921 = vunpack.c.l.b16 %v286
    %v922 = vunpack.c.l.b16 %v287
    %v923 = vunpack.c.l.b16 %v288
    %v924 = vunpack.c.l.b16 %v289
    %v925 = vunpack.c.l.b16 %v290
    %v926 = vunpack.c.l.b16 %v291
    %v927 = vunpack.c.l.b16 %v292
    %v928 = vunpack.c.l.b16 %v293
    %v929 = vunpack.c.l.b16 %v294
    %v930 = vunpack.c.l.b16 %v295
    %v931 = vunpack.c.l.b16 %v296
    %v932 = vunpack.c.l.b16 %v297
    %v933 = vunpack.c.l.b16 %v298
    %v934 = vunpack.c.l.b16 %v299
    %v935 = vunpack.c.l.b16 %v300
    %v936 = vunpack.c.l.b16 %v301
    %v937 = vunpack.c.l.b16 %v302
    %v938 = vunpack.c.l.b16 %v303
    %v939 = vunpack.c.l.b16 %v304
    %v940 = vunpack.c.l.b16 %v305
    %v941 = vunpack.c.l.b16 %v306
    %v942 = vunpack.c.l.b16 %v307
    %v943 = vunpack.c.l.b16 %v308
    %v944 = vunpack.c.l.b16 %v309
    %v945 = vunpack.c.l.b16 %v310
    %v946 = vunpack.c.l.b16 %v311
    %v947 = vunpack.c.l.b16 %v312
    %v948 = vunpack.c.l.b16 %v313
    %v949 = vunpack.c.l.b16 %v314
    %v950 = vunpack.c.l.b16 %v315
    %v951 = vunpack.c.l.b16 %v316
    %v952 = vunpack.c.l.b16 %v317
    %v953 = vunpack.c.l.b16 %v318
    %v954 = vpack.c.b16 %v699, %v698
    %v955 = vpack.c.b16 %v701, %v700
    %v956 = vpack.c.b16 %v703, %v702
    %v957 = vpack.c.b16 %v705, %v704
    %v958 = vpack.c.b16 %v707, %v706
    %v959 = vpack.c.b16 %v709, %v708
    %v960 = vpack.c.b16 %v711, %v710
    %v961 = vpack.c.b16 %v713, %v712
    %v962 = vpack.c.b16 %v715, %v714
    %v963 = vpack.c.b16 %v717, %v716
    %v964 = vpack.c.b16 %v719, %v718
    %v965 = vpack.c.b16 %v721, %v720
    %v966 = vpack.c.b16 %v723, %v722
    %v967 = vpack.c.b16 %v725, %v724
    %v968 = vpack.c.b16 %v727, %v726
    %v969 = vpack.c.b16 %v729, %v728
    %v970 = vpack.c.b16 %v731, %v730
    %v971 = vpack.c.b16 %v733, %v732
    %v972 = vpack.c.b16 %v735, %v734
    %v973 = vpack.c.b16 %v737, %v736
    %v974 = vpack.c.b16 %v739, %v738
    %v975 = vpack.c.b16 %v741, %v740
    %v976 = vpack.c.b16 %v743, %v742
    %v977 = vpack.c.b16 %v745, %v744
    %v978 = vpack.c.b16 %v747, %v746
    %v979 = vpack.c.b16 %v749, %v748
    %v980 = vpack.c.b16 %v751, %v750
    %v981 = vpack.c.b16 %v753, %v752
    %v982 = vpack.c.b16 %v755, %v754
    %v983 = vpack.c.b16 %v757, %v756
    %v984 = vpack.c.b16 %v759, %v758
    %v985 = vpack.c.b16 %v761, %v760
    %v986 = vpack.c.b16 %v763, %v762
    %v987 = vpack.c.b16 %v765, %v764
    %v988 = vpack.c.b16 %v767, %v766
    %v989 = vpack.c.b16 %v769, %v768
    %v990 = vpack.c.b16 %v771, %v770
    %v991 = vpack.c.b16 %v773, %v772
    %v992 = vpack.c.b16 %v775, %v774
    %v993 = vpack.c.b16 %v777, %v776
    %v994 = vpack.c.b16 %v779, %v778
    %v995 = vpack.c.b16 %v781, %v780
    %v996 = vpack.c.b16 %v783, %v782
    %v997 = vpack.c.b16 %v785, %v784
    %v998 = vpack.c.b16 %v787, %v786
    %v999 = vpack.c.b16 %v789, %v788
    %v1000 = vpack.c.b16 %v791, %v790
    %v1001 = vpack.c.b16 %v793, %v792
    %v1002 = vpack.c.b16 %v795, %v794
    %v1003 = vpack.c.b16 %v797, %v796
    %v1004 = vpack.c.b16 %v799, %v798
    %v1005 = vpack.c.b16 %v801, %v800
    %v1006 = vpack.c.b16 %v803, %v802
    %v1007 = vpack.c.b16 %v805, %v804
    %v1008 = vpack.c.b16 %v807, %v806
    %v1009 = vpack.c.b16 %v809, %v808
    %v1010 = vpack.c.b16 %v811, %v810
    %v1011 = vpack.c.b16 %v813, %v812
    %v1012 = vpack.c.b16 %v815, %v814
    %v1013 = vpack.c.b16 %v817, %v816
    %v1014 = vpack.c.b16 %v819, %v818
    %v1015 = vpack.c.b16 %v821, %v820
    %v1016 = vpack.c.b16 %v823, %v822
    %v1017 = vpack.c.b16 %v825, %v824
    %v1018 = vpack.c.b16 %v827, %v826
    %v1019 = vpack.c.b16 %v829, %v828
    %v1020 = vpack.c.b16 %v831, %v830
    %v1021 = vpack.c.b16 %v833, %v832
    %v1022 = vpack.c.b16 %v835, %v834
    %v1023 = vpack.c.b16 %v837, %v836
    %v1024 = vpack.c.b16 %v839, %v838
    %v1025 = vpack.c.b16 %v841, %v840
    %v1026 = vpack.c.b16 %v843, %v842
    %v1027 = vpack.c.b16 %v845, %v844
    %v1028 = vpack.c.b16 %v847, %v846
    %v1029 = vpack.c.b16 %v849, %v848
    %v1030 = vpack.c.b16 %v851, %v850
    %v1031 = vpack.c.b16 %v853, %v852
    %v1032 = vpack.c.b16 %v855, %v854
    %v1033 = vpack.c.b16 %v857, %v856
    %v1034 = vpack.c.b16 %v859, %v858
    %v1035 = vpack.c.b16 %v861, %v860
    %v1036 = vpack.c.b16 %v863, %v862
    %v1037 = vpack.c.b16 %v865, %v864
    %v1038 = vpack.c.b16 %v867, %v866
    %v1039 = vpack.c.b16 %v869, %v868
    %v1040 = vpack.c.b16 %v871, %v870
    %v1041 = vpack.c.b16 %v873, %v872
    %v1042 = vpack.c.b16 %v875, %v874
    %v1043 = vpack.c.b16 %v877, %v876
    %v1044 = vpack.c.b16 %v879, %v878
    %v1045 = vpack.c.b16 %v881, %v880
    %v1046 = vpack.c.b16 %v883, %v882
    %v1047 = vpack.c.b16 %v885, %v884
    %v1048 = vpack.c.b16 %v887, %v886
    %v1049 = vpack.c.b16 %v889, %v888
    %v1050 = vpack.c.b16 %v891, %v890
    %v1051 = vpack.c.b16 %v893, %v892
    %v1052 = vpack.c.b16 %v895, %v894
    %v1053 = vpack.c.b16 %v897, %v896
    %v1054 = vpack.c.b16 %v899, %v898
    %v1055 = vpack.c.b16 %v901, %v900
    %v1056 = vpack.c.b16 %v903, %v902
    %v1057 = vpack.c.b16 %v905, %v904
    %v1058 = vpack.c.b16 %v907, %v906
    %v1059 = vpack.c.b16 %v909, %v908
    %v1060 = vpack.c.b16 %v911, %v910
    %v1061 = vpack.c.b16 %v913, %v912
    %v1062 = vpack.c.b16 %v915, %v914
    %v1063 = vpack.c.b16 %v917, %v916
    %v1064 = vpack.c.b16 %v919, %v918
    %v1065 = vpack.c.b16 %v921, %v920
    %v1066 = vpack.c.b16 %v923, %v922
    %v1067 = vpack.c.b16 %v925, %v924
    %v1068 = vpack.c.b16 %v927, %v926
    %v1069 = vpack.c.b16 %v929, %v928
    %v1070 = vpack.c.b16 %v931, %v930
    %v1071 = vpack.c.b16 %v933, %v932
    %v1072 = vpack.c.b16 %v935, %v934
    %v1073 = vpack.c.b16 %v937, %v936
    %v1074 = vpack.c.b16 %v939, %v938
    %v1075 = vpack.c.b16 %v941, %v940
    %v1076 = vpack.c.b16 %v943, %v942
    %v1077 = vpack.c.b16 %v945, %v944
    %v1078 = vpack.c.b16 %v947, %v946
    %v1079 = vpack.c.b16 %v949, %v948
    %v1080 = vpack.c.b16 %v951, %v950
    %v1081 = vpack.c.b16 %v953, %v952
    %1210 = vmatprep.subr.bf16.mxu0 0
    %1211 = vmatpush1.bf16.msra.mxu0 %v954
    %1212 = vmatprep.subr.bf16.mxu0 0
    %1213 = vmatpush1.bf16.msra.mxu0 %v955
    %1214 = vmatprep.subr.bf16.mxu0 0
    %1215 = vmatpush1.bf16.msra.mxu0 %v956
    %1216 = vmatprep.subr.bf16.mxu0 0
    %1217 = vmatpush1.bf16.msra.mxu0 %v957
    %1218 = vmatprep.subr.bf16.mxu0 0
    %1219 = vmatpush1.bf16.msra.mxu0 %v958
    %1220 = vmatprep.subr.bf16.mxu0 0
    %1221 = vmatpush1.bf16.msra.mxu0 %v959
    %1222 = vmatprep.subr.bf16.mxu0 0
    %1223 = vmatpush1.bf16.msra.mxu0 %v960
    %1224 = vmatprep.subr.bf16.mxu0 0
    %1225 = vmatpush1.bf16.msra.mxu0 %v961
    %1226 = vmatprep.subr.bf16.mxu0 0
    %1227 = vmatpush1.bf16.msra.mxu0 %v962
    %1228 = vmatprep.subr.bf16.mxu0 0
    %1229 = vmatpush1.bf16.msra.mxu0 %v963
    %1230 = vmatprep.subr.bf16.mxu0 0
    %1231 = vmatpush1.bf16.msra.mxu0 %v964
    %1232 = vmatprep.subr.bf16.mxu0 0
    %1233 = vmatpush1.bf16.msra.mxu0 %v965
    %1234 = vmatprep.subr.bf16.mxu0 0
    %1235 = vmatpush1.bf16.msra.mxu0 %v966
    %1236 = vmatprep.subr.bf16.mxu0 0
    %1237 = vmatpush1.bf16.msra.mxu0 %v967
    %1238 = vmatprep.subr.bf16.mxu0 0
    %1239 = vmatpush1.bf16.msra.mxu0 %v968
    %1240 = vmatprep.subr.bf16.mxu0 0
    %1241 = vmatpush1.bf16.msra.mxu0 %v969
    %1242 = vmatprep.mubr.bf16.mxu0 %v365
    %1243 = vmatmul.mubr.bf16.gmra.mrb[0].mxu0 %v351
    %v1244 = vpop.f32.mrb[0].mxu0
    %v1245 = vadd.f32 %v324, %v1244
    %v1246 = vpop.f32.mrb[0].mxu0
    %v1247 = vpop.f32.mrb[0].mxu0
    %v1248 = vpop.f32.mrb[0].mxu0
    %1249 = vdwg.mxu0
    %1250 = vmatprep.subr.bf16.mxu0 0
    %1251 = vmatpush1.bf16.msra.mxu0 %v970
    %1252 = vmatprep.subr.bf16.mxu0 0
    %1253 = vmatpush1.bf16.msra.mxu0 %v971
    %1254 = vmatprep.subr.bf16.mxu0 0
    %1255 = vmatpush1.bf16.msra.mxu0 %v972
    %1256 = vmatprep.subr.bf16.mxu0 0
    %1257 = vmatpush1.bf16.msra.mxu0 %v973
    %1258 = vmatprep.subr.bf16.mxu0 0
    %1259 = vmatpush1.bf16.msra.mxu0 %v974
    %1260 = vmatprep.subr.bf16.mxu0 0
    %1261 = vmatpush1.bf16.msra.mxu0 %v975
    %1262 = vmatprep.subr.bf16.mxu0 0
    %1263 = vmatpush1.bf16.msra.mxu0 %v976
    %1264 = vmatprep.subr.bf16.mxu0 0
    %1265 = vmatpush1.bf16.msra.mxu0 %v977
    %1266 = vmatprep.subr.bf16.mxu0 0
    %1267 = vmatpush1.bf16.msra.mxu0 %v978
    %1268 = vmatprep.subr.bf16.mxu0 0
    %1269 = vmatpush1.bf16.msra.mxu0 %v979
    %1270 = vmatprep.subr.bf16.mxu0 0
    %1271 = vmatpush1.bf16.msra.mxu0 %v980
    %1272 = vmatprep.subr.bf16.mxu0 0
    %1273 = vmatpush1.bf16.msra.mxu0 %v981
    %1274 = vmatprep.subr.bf16.mxu0 0
    %1275 = vmatpush1.bf16.msra.mxu0 %v982
    %1276 = vmatprep.subr.bf16.mxu0 0
    %1277 = vmatpush1.bf16.msra.mxu0 %v983
    %1278 = vmatprep.subr.bf16.mxu0 0
    %1279 = vmatpush1.bf16.msra.mxu0 %v984
    %1280 = vmatprep.subr.bf16.mxu0 0
    %1281 = vmatpush1.bf16.msra.mxu0 %v985
    %1282 = vmatprep.mubr.bf16.mxu0 %v375
    %1283 = vmatmul.mubr.bf16.gmra.mrb[0].mxu0 %v373
    %v1284 = vpop.f32.mrb[0].mxu0
    %v1285 = vadd.f32 %v1245, %v1284
    %v1286 = vpop.f32.mrb[0].mxu0
    %v1287 = vpop.f32.mrb[0].mxu0
    %v1288 = vpop.f32.mrb[0].mxu0
    %1289 = vdwg.mxu0
    %1290 = vmatprep.subr.bf16.mxu0 0
    %1291 = vmatpush1.bf16.msra.mxu0 %v986
    %1292 = vmatprep.subr.bf16.mxu0 0
    %1293 = vmatpush1.bf16.msra.mxu0 %v987
    %1294 = vmatprep.subr.bf16.mxu0 0
    %1295 = vmatpush1.bf16.msra.mxu0 %v988
    %1296 = vmatprep.subr.bf16.mxu0 0
    %1297 = vmatpush1.bf16.msra.mxu0 %v989
    %1298 = vmatprep.subr.bf16.mxu0 0
    %1299 = vmatpush1.bf16.msra.mxu0 %v990
    %1300 = vmatprep.subr.bf16.mxu0 0
    %1301 = vmatpush1.bf16.msra.mxu0 %v991
    %1302 = vmatprep.subr.bf16.mxu0 0
    %1303 = vmatpush1.bf16.msra.mxu0 %v992
    %1304 = vmatprep.subr.bf16.mxu0 0
    %1305 = vmatpush1.bf16.msra.mxu0 %v993
    %1306 = vmatprep.subr.bf16.mxu0 0
    %1307 = vmatpush1.bf16.msra.mxu0 %v994
    %1308 = vmatprep.subr.bf16.mxu0 0
    %1309 = vmatpush1.bf16.msra.mxu0 %v995
    %1310 = vmatprep.subr.bf16.mxu0 0
    %1311 = vmatpush1.bf16.msra.mxu0 %v996
    %1312 = vmatprep.subr.bf16.mxu0 0
    %1313 = vmatpush1.bf16.msra.mxu0 %v997
    %1314 = vmatprep.subr.bf16.mxu0 0
    %1315 = vmatpush1.bf16.msra.mxu0 %v998
    %1316 = vmatprep.subr.bf16.mxu0 0
    %1317 = vmatpush1.bf16.msra.mxu0 %v999
    %1318 = vmatprep.subr.bf16.mxu0 0
    %1319 = vmatpush1.bf16.msra.mxu0 %v1000
    %1320 = vmatprep.subr.bf16.mxu0 0
    %1321 = vmatpush1.bf16.msra.mxu0 %v1001
    %1322 = vmatprep.mubr.bf16.mxu0 %v372
    %1323 = vmatmul.mubr.bf16.gmra.mrb[0].mxu0 %v358
    %v1324 = vpop.f32.mrb[0].mxu0
    %v1325 = vadd.f32 %v1285, %v1324
    %v1326 = vpop.f32.mrb[0].mxu0
    %v1327 = vpop.f32.mrb[0].mxu0
    %v1328 = vpop.f32.mrb[0].mxu0
    %1329 = vdwg.mxu0
    %1330 = vmatprep.subr.bf16.mxu0 0
    %1331 = vmatpush1.bf16.msra.mxu0 %v1002
    %1332 = vmatprep.subr.bf16.mxu0 0
    %1333 = vmatpush1.bf16.msra.mxu0 %v1003
    %1334 = vmatprep.subr.bf16.mxu0 0
    %1335 = vmatpush1.bf16.msra.mxu0 %v1004
    %1336 = vmatprep.subr.bf16.mxu0 0
    %1337 = vmatpush1.bf16.msra.mxu0 %v1005
    %1338 = vmatprep.subr.bf16.mxu0 0
    %1339 = vmatpush1.bf16.msra.mxu0 %v1006
    %1340 = vmatprep.subr.bf16.mxu0 0
    %1341 = vmatpush1.bf16.msra.mxu0 %v1007
    %1342 = vmatprep.subr.bf16.mxu0 0
    %1343 = vmatpush1.bf16.msra.mxu0 %v1008
    %1344 = vmatprep.subr.bf16.mxu0 0
    %1345 = vmatpush1.bf16.msra.mxu0 %v1009
    %1346 = vmatprep.subr.bf16.mxu0 0
    %1347 = vmatpush1.bf16.msra.mxu0 %v1010
    %1348 = vmatprep.subr.bf16.mxu0 0
    %1349 = vmatpush1.bf16.msra.mxu0 %v1011
    %1350 = vmatprep.subr.bf16.mxu0 0
    %1351 = vmatpush1.bf16.msra.mxu0 %v1012
    %1352 = vmatprep.subr.bf16.mxu0 0
    %1353 = vmatpush1.bf16.msra.mxu0 %v1013
    %1354 = vmatprep.subr.bf16.mxu0 0
    %1355 = vmatpush1.bf16.msra.mxu0 %v1014
    %1356 = vmatprep.subr.bf16.mxu0 0
    %1357 = vmatpush1.bf16.msra.mxu0 %v1015
    %1358 = vmatprep.subr.bf16.mxu0 0
    %1359 = vmatpush1.bf16.msra.mxu0 %v1016
    %1360 = vmatprep.subr.bf16.mxu0 0
    %1361 = vmatpush1.bf16.msra.mxu0 %v1017
    %1362 = vmatprep.mubr.bf16.mxu0 %v376
    %1363 = vmatmul.mubr.bf16.gmra.mrb[0].mxu0 %v374
    %v1364 = vpop.f32.mrb[0].mxu0
    %v1365 = vadd.f32 %v1325, %v1364
    %v1366 = vpop.f32.mrb[0].mxu0
    %v1367 = vpop.f32.mrb[0].mxu0
    %v1368 = vpop.f32.mrb[0].mxu0
    %1369 = vdwg.mxu0
    %1370 = vmatprep.subr.bf16.mxu0 0
    %1371 = vmatpush1.bf16.msra.mxu0 %v1018
    %1372 = vmatprep.subr.bf16.mxu0 0
    %1373 = vmatpush1.bf16.msra.mxu0 %v1019
    %1374 = vmatprep.subr.bf16.mxu0 0
    %1375 = vmatpush1.bf16.msra.mxu0 %v1020
    %1376 = vmatprep.subr.bf16.mxu0 0
    %1377 = vmatpush1.bf16.msra.mxu0 %v1021
    %1378 = vmatprep.subr.bf16.mxu0 0
    %1379 = vmatpush1.bf16.msra.mxu0 %v1022
    %1380 = vmatprep.subr.bf16.mxu0 0
    %1381 = vmatpush1.bf16.msra.mxu0 %v1023
    %1382 = vmatprep.subr.bf16.mxu0 0
    %1383 = vmatpush1.bf16.msra.mxu0 %v1024
    %1384 = vmatprep.subr.bf16.mxu0 0
    %1385 = vmatpush1.bf16.msra.mxu0 %v1025
    %1386 = vmatprep.subr.bf16.mxu0 0
    %1387 = vmatpush1.bf16.msra.mxu0 %v1026
    %1388 = vmatprep.subr.bf16.mxu0 0
    %1389 = vmatpush1.bf16.msra.mxu0 %v1027
    %1390 = vmatprep.subr.bf16.mxu0 0
    %1391 = vmatpush1.bf16.msra.mxu0 %v1028
    %1392 = vmatprep.subr.bf16.mxu0 0
    %1393 = vmatpush1.bf16.msra.mxu0 %v1029
    %1394 = vmatprep.subr.bf16.mxu0 0
    %1395 = vmatpush1.bf16.msra.mxu0 %v1030
    %1396 = vmatprep.subr.bf16.mxu0 0
    %1397 = vmatpush1.bf16.msra.mxu0 %v1031
    %1398 = vmatprep.subr.bf16.mxu0 0
    %1399 = vmatpush1.bf16.msra.mxu0 %v1032
    %1400 = vmatprep.subr.bf16.mxu0 0
    %1401 = vmatpush1.bf16.msra.mxu0 %v1033
    %1402 = vmatprep.mubr.bf16.mxu0 %v414
    %1403 = vmatmul.mubr.bf16.gmra.mrb[0].mxu0 %v400
    %v1404 = vpop.f32.mrb[0].mxu0
    %v1405 = vadd.f32 %v1365, %v1404
    %v1406 = vpop.f32.mrb[0].mxu0
    %v1407 = vpop.f32.mrb[0].mxu0
    %v1408 = vpop.f32.mrb[0].mxu0
    %1409 = vdwg.mxu0
    %1410 = vmatprep.subr.bf16.mxu0 0
    %1411 = vmatpush1.bf16.msra.mxu0 %v1034
    %1412 = vmatprep.subr.bf16.mxu0 0
    %1413 = vmatpush1.bf16.msra.mxu0 %v1035
    %1414 = vmatprep.subr.bf16.mxu0 0
    %1415 = vmatpush1.bf16.msra.mxu0 %v1036
    %1416 = vmatprep.subr.bf16.mxu0 0
    %1417 = vmatpush1.bf16.msra.mxu0 %v1037
    %1418 = vmatprep.subr.bf16.mxu0 0
    %1419 = vmatpush1.bf16.msra.mxu0 %v1038
    %1420 = vmatprep.subr.bf16.mxu0 0
    %1421 = vmatpush1.bf16.msra.mxu0 %v1039
    %1422 = vmatprep.subr.bf16.mxu0 0
    %1423 = vmatpush1.bf16.msra.mxu0 %v1040
    %1424 = vmatprep.subr.bf16.mxu0 0
    %1425 = vmatpush1.bf16.msra.mxu0 %v1041
    %1426 = vmatprep.subr.bf16.mxu0 0
    %1427 = vmatpush1.bf16.msra.mxu0 %v1042
    %1428 = vmatprep.subr.bf16.mxu0 0
    %1429 = vmatpush1.bf16.msra.mxu0 %v1043
    %1430 = vmatprep.subr.bf16.mxu0 0
    %1431 = vmatpush1.bf16.msra.mxu0 %v1044
    %1432 = vmatprep.subr.bf16.mxu0 0
    %1433 = vmatpush1.bf16.msra.mxu0 %v1045
    %1434 = vmatprep.subr.bf16.mxu0 0
    %1435 = vmatpush1.bf16.msra.mxu0 %v1046
    %1436 = vmatprep.subr.bf16.mxu0 0
    %1437 = vmatpush1.bf16.msra.mxu0 %v1047
    %1438 = vmatprep.subr.bf16.mxu0 0
    %1439 = vmatpush1.bf16.msra.mxu0 %v1048
    %1440 = vmatprep.subr.bf16.mxu0 0
    %1441 = vmatpush1.bf16.msra.mxu0 %v1049
    %1442 = vmatprep.mubr.bf16.mxu0 %v424
    %1443 = vmatmul.mubr.bf16.gmra.mrb[0].mxu0 %v422
    %v1444 = vpop.f32.mrb[0].mxu0
    %v1445 = vadd.f32 %v1405, %v1444
    %v1446 = vpop.f32.mrb[0].mxu0
    %v1447 = vpop.f32.mrb[0].mxu0
    %v1448 = vpop.f32.mrb[0].mxu0
    %1449 = vdwg.mxu0
    %1450 = vmatprep.subr.bf16.mxu0 0
    %1451 = vmatpush1.bf16.msra.mxu0 %v1050
    %1452 = vmatprep.subr.bf16.mxu0 0
    %1453 = vmatpush1.bf16.msra.mxu0 %v1051
    %1454 = vmatprep.subr.bf16.mxu0 0
    %1455 = vmatpush1.bf16.msra.mxu0 %v1052
    %1456 = vmatprep.subr.bf16.mxu0 0
    %1457 = vmatpush1.bf16.msra.mxu0 %v1053
    %1458 = vmatprep.subr.bf16.mxu0 0
    %1459 = vmatpush1.bf16.msra.mxu0 %v1054
    %1460 = vmatprep.subr.bf16.mxu0 0
    %1461 = vmatpush1.bf16.msra.mxu0 %v1055
    %1462 = vmatprep.subr.bf16.mxu0 0
    %1463 = vmatpush1.bf16.msra.mxu0 %v1056
    %1464 = vmatprep.subr.bf16.mxu0 0
    %1465 = vmatpush1.bf16.msra.mxu0 %v1057
    %1466 = vmatprep.subr.bf16.mxu0 0
    %1467 = vmatpush1.bf16.msra.mxu0 %v1058
    %1468 = vmatprep.subr.bf16.mxu0 0
    %1469 = vmatpush1.bf16.msra.mxu0 %v1059
    %1470 = vmatprep.subr.bf16.mxu0 0
    %1471 = vmatpush1.bf16.msra.mxu0 %v1060
    %1472 = vmatprep.subr.bf16.mxu0 0
    %1473 = vmatpush1.bf16.msra.mxu0 %v1061
    %1474 = vmatprep.subr.bf16.mxu0 0
    %1475 = vmatpush1.bf16.msra.mxu0 %v1062
    %1476 = vmatprep.subr.bf16.mxu0 0
    %1477 = vmatpush1.bf16.msra.mxu0 %v1063
    %1478 = vmatprep.subr.bf16.mxu0 0
    %1479 = vmatpush1.bf16.msra.mxu0 %v1064
    %1480 = vmatprep.subr.bf16.mxu0 0
    %1481 = vmatpush1.bf16.msra.mxu0 %v1065
    %1482 = vmatprep.mubr.bf16.mxu0 %v421
    %1483 = vmatmul.mubr.bf16.gmra.mrb[0].mxu0 %v407
    %v1484 = vpop.f32.mrb[0].mxu0
    %v1485 = vadd.f32 %v1445, %v1484
    %v1486 = vpop.f32.mrb[0].mxu0
    %v1487 = vpop.f32.mrb[0].mxu0
    %v1488 = vpop.f32.mrb[0].mxu0
    %1489 = vdwg.mxu0
    %1490 = vmatprep.subr.bf16.mxu0 0
    %1491 = vmatpush1.bf16.msra.mxu0 %v1066
    %1492 = vmatprep.subr.bf16.mxu0 0
    %1493 = vmatpush1.bf16.msra.mxu0 %v1067
    %1494 = vmatprep.subr.bf16.mxu0 0
    %1495 = vmatpush1.bf16.msra.mxu0 %v1068
    %1496 = vmatprep.subr.bf16.mxu0 0
    %1497 = vmatpush1.bf16.msra.mxu0 %v1069
    %1498 = vmatprep.subr.bf16.mxu0 0
    %1499 = vmatpush1.bf16.msra.mxu0 %v1070
    %1500 = vmatprep.subr.bf16.mxu0 0
    %1501 = vmatpush1.bf16.msra.mxu0 %v1071
    %1502 = vmatprep.subr.bf16.mxu0 0
    %1503 = vmatpush1.bf16.msra.mxu0 %v1072
    %1504 = vmatprep.subr.bf16.mxu0 0
    %1505 = vmatpush1.bf16.msra.mxu0 %v1073
    %1506 = vmatprep.subr.bf16.mxu0 0
    %1507 = vmatpush1.bf16.msra.mxu0 %v1074
    %1508 = vmatprep.subr.bf16.mxu0 0
    %1509 = vmatpush1.bf16.msra.mxu0 %v1075
    %1510 = vmatprep.subr.bf16.mxu0 0
    %1511 = vmatpush1.bf16.msra.mxu0 %v1076
    %1512 = vmatprep.subr.bf16.mxu0 0
    %1513 = vmatpush1.bf16.msra.mxu0 %v1077
    %1514 = vmatprep.subr.bf16.mxu0 0
    %1515 = vmatpush1.bf16.msra.mxu0 %v1078
    %1516 = vmatprep.subr.bf16.mxu0 0
    %1517 = vmatpush1.bf16.msra.mxu0 %v1079
    %1518 = vmatprep.subr.bf16.mxu0 0
    %1519 = vmatpush1.bf16.msra.mxu0 %v1080
    %1520 = vmatprep.subr.bf16.mxu0 0
    %1521 = vmatpush1.bf16.msra.mxu0 %v1081
    %1522 = vmatprep.mubr.bf16.mxu0 %v425
    %1523 = vmatmul.mubr.bf16.gmra.mrb[0].mxu0 %v423
    %v1524 = vpop.f32.mrb[0].mxu0
    %v1525 = vadd.f32 %v1485, %v1524
    %v1526 = vpop.f32.mrb[0].mxu0
    %v1527 = vpop.f32.mrb[0].mxu0
    %v1528 = vpop.f32.mrb[0].mxu0
    %1529 = vdwg.mxu0
    %v1530 = vmax.f32 %v1525, 0.0
    %v1531 = vld [vmem:[#allocation7] sm:$0xff]
    %v1532 = vld [vmem:[#allocation7 + $0x8] sm:$0xff]
    %v1533 = vld [vmem:[#allocation7 + $0x10] sm:$0xff]
    %v1534 = vld [vmem:[#allocation7 + $0x18] sm:$0xff]
    %v1535 = vld [vmem:[#allocation7 + $0x20] sm:$0xff]
    %v1536 = vld [vmem:[#allocation7 + $0x28] sm:$0xff]
    %v1537 = vld [vmem:[#allocation7 + $0x30] sm:$0xff]
    %v1538 = vld [vmem:[#allocation7 + $0x38] sm:$0xff]
    %v1539 = vld [vmem:[#allocation7 + $0x40] sm:$0xff]
    %v1540 = vld [vmem:[#allocation7 + $0x48] sm:$0xff]
    %v1541 = vld [vmem:[#allocation7 + $0x50] sm:$0xff]
    %v1542 = vld [vmem:[#allocation7 + $0x58] sm:$0xff]
    %v1543 = vld [vmem:[#allocation7 + $0x60] sm:$0xff]
    %v1544 = vld [vmem:[#allocation7 + $0x68] sm:$0xff]
    %v1545 = vld [vmem:[#allocation7 + $0x70] sm:$0xff]
    %v1546 = vld [vmem:[#allocation7 + $0x78] sm:$0xff]
    %v1547 = vld [vmem:[%s4] sm:$0x1]
    %v1549 = vlaneseq
    %v1550 = vshrl.u32 %v1549, 7
    %v1551 = vsub.s32 0, %v1550
    %v1552 = vrot.slane %v1547, %v1551
    %1554 = vmatprep.subr.mxu0 0.0
    %1555 = vmatpush1.msra.mxu0 %v1531
    %1556 = vmatprep.subr.mxu0 0.0
    %1557 = vmatpush1.msra.mxu0 %v1532
    %1558 = vmatprep.subr.mxu0 0.0
    %1559 = vmatpush1.msra.mxu0 %v1533
    %1560 = vmatprep.subr.mxu0 0.0
    %1561 = vmatpush1.msra.mxu0 %v1534
    %1562 = vmatprep.subr.mxu0 0.0
    %1563 = vmatpush1.msra.mxu0 %v1535
    %1564 = vmatprep.subr.mxu0 0.0
    %1565 = vmatpush1.msra.mxu0 %v1536
    %1566 = vmatprep.subr.mxu0 0.0
    %1567 = vmatpush1.msra.mxu0 %v1537
    %1568 = vmatprep.subr.mxu0 0.0
    %1569 = vmatpush1.msra.mxu0 %v1538
    %1570 = vmatprep.subr.mxu0 0.0
    %1571 = vmatpush1.msra.mxu0 %v1539
    %1572 = vmatprep.subr.mxu0 0.0
    %1573 = vmatpush1.msra.mxu0 %v1540
    %1574 = vmatprep.subr.mxu0 0.0
    %1575 = vmatpush1.msra.mxu0 %v1541
    %1576 = vmatprep.subr.mxu0 0.0
    %1577 = vmatpush1.msra.mxu0 %v1542
    %1578 = vmatprep.subr.mxu0 0.0
    %1579 = vmatpush1.msra.mxu0 %v1543
    %1580 = vmatprep.subr.mxu0 0.0
    %1581 = vmatpush1.msra.mxu0 %v1544
    %1582 = vmatprep.subr.mxu0 0.0
    %1583 = vmatpush1.msra.mxu0 %v1545
    %1584 = vmatprep.subr.mxu0 0.0
    %1585 = vmatpush1.msra.mxu0 %v1546
    %1586 = vmatprep.subr.mxu0 0.0
    %1587 = vmatpush1.msra.mxu0 0.0
    %1588 = vmatprep.subr.mxu0 0.0
    %1589 = vmatpush1.msra.mxu0 0.0
    %1590 = vmatprep.subr.mxu0 0.0
    %1591 = vmatpush1.msra.mxu0 0.0
    %1592 = vmatprep.subr.mxu0 0.0
    %1593 = vmatpush1.msra.mxu0 0.0
    %1594 = vmatprep.subr.mxu0 0.0
    %1595 = vmatpush1.msra.mxu0 0.0
    %1596 = vmatprep.subr.mxu0 0.0
    %1597 = vmatpush1.msra.mxu0 0.0
    %1598 = vmatprep.subr.mxu0 0.0
    %1599 = vmatpush1.msra.mxu0 0.0
    %1600 = vmatprep.subr.mxu0 0.0
    %1601 = vmatpush1.msra.mxu0 0.0
    %1602 = vmatprep.subr.mxu0 0.0
    %1603 = vmatpush1.msra.mxu0 0.0
    %1604 = vmatprep.subr.mxu0 0.0
    %1605 = vmatpush1.msra.mxu0 0.0
    %1606 = vmatprep.subr.mxu0 0.0
    %1607 = vmatpush1.msra.mxu0 0.0
    %1608 = vmatprep.subr.mxu0 0.0
    %1609 = vmatpush1.msra.mxu0 0.0
    %1610 = vmatprep.subr.mxu0 0.0
    %1611 = vmatpush1.msra.mxu0 0.0
    %1612 = vmatprep.subr.mxu0 0.0
    %1613 = vmatpush1.msra.mxu0 0.0
    %1614 = vmatprep.subr.mxu0 0.0
    %1615 = vmatpush1.msra.mxu0 0.0
    %1616 = vmatprep.subr.mxu0 0.0
    %1617 = vmatpush1.msra.mxu0 0.0
    %1618 = vmatprep.mubr.f32.mxu0 0.0
    %1619 = vmatmul.mubr.f32.gmra.mrb[0].mxu0 %v1530
    %v1620 = vpop.f32.mrb[0].mxu0
    %v1621 = vadd.f32 %v1552, %v1620
    %v1622 = vpop.f32.mrb[0].mxu0
    %1623 = vdwg.mxu0
    %vm1624 = vcmask 1041408
    %v1625 = vsel %vm1624, %v1621, -inf
    %1626 = vmax.xlane.f32.xlu0 %v1625
    %v1627 = vpop.xlane.xlu0 %1626
    %v1628 = vsub.f32 %v1621, %v1627
    %v1629 = vmul.f32 %v1628, 1.442695
    %v1630 = vpow.pop %v1629
    %v1631 = vsel %vm1624, %v1630, 0.0
    %1632 = vadd.xlane.f32.xlu0 %v1631
    %v1633 = vpop.xlane.xlu0 %1632
    %v1634 = vrcp.pop %v1633
    %v1635 = vmul.f32 %v1630, %v1634
    %1636 = vst [vmem:[#allocation8] sm:$0x3] %v1635
    // Predicated region
    $region34: #{tpu_custom_call.1} parent=1 // pred_check
      _
    $region35: #{tpu_custom_call.1} parent=1 // pred_check_branch
      %1638 = sbr.rel (0) target = $region37
    $region36: #{tpu_custom_call.1} parent=1 // pred_region
      %s1640 = ssub.s32 32, 32
      %1641 = vsyncadd [#allocation4], %s1640
      %s1643 = sshll.u32 [#allocation8], 4
      %s1644 = int_to_ptr.vmem [resolvable:$true] %s1643
      %1646 = dma.vmem_to_hbm [thread:$0]  %s1644, 32, %s5, [#allocation4]
    $region37: #{tpu_custom_call.1} parent=1 // pred_fallthru
      _
    // Predicated region
    $region38: #{tpu_custom_call.1} parent=1 // pred_check
      _
    $region39: #{tpu_custom_call.1} parent=1 // pred_check_branch
      %1648 = sbr.rel (0) target = $region41
    $region40: #{tpu_custom_call.1} parent=1 // pred_region
      %1649 = dma.done [#allocation4], 32
    $region41: #{tpu_custom_call.1} parent=1 // pred_fallthru
      _
    %1650 = vsyncpa [#allocation3], 1
    %1651 = vsyncpa [#allocation6], 1
    %1652 = vsyncpa [#allocation4], 1

</llo_original>
